<compile_context>
chip_gen: v6e
topology: v6e:2x2x1
jax: 0.10.0
libtpu: 0.0.40
codegen_flags: <defaults>
</compile_context>

<pallas_src>
import functools

import jax
import jax.numpy as jnp
from jax.experimental import pallas as pl
from jax.experimental.pallas import tpu as pltpu


def _fused_kernel(a_ref, b_ref, w_ref, gamma_ref, beta_ref, o_ref, *, eps, inv_p):
    # a_ref, b_ref : (C_in, P)        residual inputs, channels-major, P = N*H*W
    # w_ref        : (TILE_CO, C_in)  1x1 conv weight row-tile
    # gamma_ref    : (TILE_CO, 1)     BN affine scale (f32)
    # beta_ref     : (TILE_CO, 1)     BN affine shift (f32)
    # o_ref        : (TILE_CO, P)

    # add + ReLU in the native input dtype (VPU).
    z = jnp.maximum(a_ref[...] + b_ref[...], 0)

    # 1x1 conv == matmul on the MXU; accumulate in f32.
    y = jnp.dot(w_ref[...], z, preferred_element_type=jnp.float32)  # (TILE_CO, P) f32

    # BatchNorm (training mode): single stats pass + single FMA pass.
    s1 = jnp.sum(y, axis=-1, keepdims=True)           # (TILE_CO, 1)
    s2 = jnp.sum(y * y, axis=-1, keepdims=True)       # (TILE_CO, 1)
    mean = s1 * inv_p
    var = jnp.maximum(s2 * inv_p - mean * mean, 0.0)   # biased variance, clamp fp noise
    inv_std = jax.lax.rsqrt(var + eps)
    scale = inv_std * gamma_ref[...]                   # (TILE_CO, 1)
    bias = beta_ref[...] - mean * scale                # (TILE_CO, 1)

    o_ref[...] = (y * scale + bias).astype(o_ref.dtype)


def fused_add_relu_conv1x1_bn(x408, x400, weight, gamma, beta, eps=1e-5, tile_co=None):
    """x408, x400: (N, C_in, H, W); weight: (C_out, C_in, 1, 1); gamma/beta: (C_out,)."""
    n, c_in, h, w = x408.shape
    c_out = weight.shape[0]
    p = n * h * w

    if n == 1:
        # Free reshape: NCHW with N==1 is already channels-major over the spatial dims.
        a2 = x408.reshape(c_in, p)
        b2 = x400.reshape(c_in, p)
    else:
        # TODO(synk): for N>1 this is a real HBM transpose pass; fold N into a grid axis
        # with cross-step stat accumulation instead.
        a2 = jnp.moveaxis(x408, 1, 0).reshape(c_in, p)
        b2 = jnp.moveaxis(x400, 1, 0).reshape(c_in, p)

    w2 = weight.reshape(c_out, c_in)
    g2 = gamma.reshape(c_out, 1).astype(jnp.float32)
    bt2 = beta.reshape(c_out, 1).astype(jnp.float32)

    # C_out row-tile: 128 for the production shape (256 -> 2 parallel grid steps),
    # otherwise any divisor (multiple of 8) works.
    if tile_co is None:
        tile_co = 128 if c_out % 128 == 0 else c_out
    assert c_out % tile_co == 0, "tile_co must divide C_out"
    n_tiles = c_out // tile_co

    kernel = functools.partial(_fused_kernel, eps=float(eps), inv_p=1.0 / float(p))

    out2 = pl.pallas_call(
        kernel,
        out_shape=jax.ShapeDtypeStruct((c_out, p), x408.dtype),
        grid=(n_tiles,),
        in_specs=[
            # Constant index maps -> inputs stay resident in VMEM across grid steps.
            pl.BlockSpec((c_in, p), lambda j: (0, 0)),
            pl.BlockSpec((c_in, p), lambda j: (0, 0)),
            pl.BlockSpec((tile_co, c_in), lambda j: (j, 0)),
            pl.BlockSpec((tile_co, 1), lambda j: (j, 0)),
            pl.BlockSpec((tile_co, 1), lambda j: (j, 0)),
        ],
        out_specs=pl.BlockSpec((tile_co, p), lambda j: (j, 0)),
        compiler_params=pltpu.CompilerParams(
            dimension_semantics=("parallel",)),
    )(a2, b2, w2, g2, bt2)

    if n == 1:
        return out2.reshape(1, c_out, h, w)   # free reshape back to NCHW
    return jnp.moveaxis(out2.reshape(c_out, n, h, w), 0, 1)


def _reference(x408, x400, weight, gamma, beta, eps=1e-5):
    z = jnp.maximum(x408 + x400, 0.0)
    w2 = weight.reshape(weight.shape[0], weight.shape[1])
    y = jnp.einsum("oc,nchw->nohw", w2, z)
    mean = jnp.mean(y, axis=(0, 2, 3), keepdims=True)
    var = jnp.mean((y - mean) ** 2, axis=(0, 2, 3), keepdims=True)
    return (y - mean) / jnp.sqrt(var + eps) * gamma.reshape(1, -1, 1, 1) \
        + beta.reshape(1, -1, 1, 1)


if __name__ == "__main__":
    # Small shapes consistent with the module (full size: 1x1024x14x14 -> 1x256x14x14).
    # Keep H=W=14 so the non-128-multiple lane path (P=196) is exercised, and use a
    # small tile_co so the multi-tile 'parallel' grid path is exercised too.
    N, C_IN, C_OUT, H, W = 1, 64, 32, 14, 14

    key = jax.random.PRNGKey(0)
    k1, k2, k3 = jax.random.split(key, 3)
    x408 = jax.random.normal(k1, (N, C_IN, H, W), dtype=jnp.float32)
    x400 = jax.random.normal(k2, (N, C_IN, H, W), dtype=jnp.float32)

    weight = jax.random.normal(k3, (C_OUT, C_IN, 1, 1), dtype=jnp.float32) * 0.05
    gamma = jnp.ones((C_OUT,), dtype=jnp.float32)   # PyTorch BN affine init
    beta = jnp.zeros((C_OUT,), dtype=jnp.float32)

    out = fused_add_relu_conv1x1_bn(x408, x400, weight, gamma, beta, tile_co=16)
    out = jax.block_until_ready(out)

    ref = _reference(x408, x400, weight, gamma, beta)
    assert out.shape == (N, C_OUT, H, W)
    assert jnp.allclose(out, ref, atol=1e-3, rtol=1e-3), "mismatch vs reference"

    print("KERNEL_OK")
</pallas_src>

<mosaic_0001>
module attributes {stable_mosaic.version = 11 : i64} {
  func.func @_fused_kernel(%arg0: i32, %arg1: memref<64x196xf32, #tpu.memory_space<vmem>>, %arg2: memref<64x196xf32, #tpu.memory_space<vmem>>, %arg3: memref<16x64xf32, #tpu.memory_space<vmem>>, %arg4: memref<16x1xf32, #tpu.memory_space<vmem>>, %arg5: memref<16x1xf32, #tpu.memory_space<vmem>>, %arg6: memref<16x196xf32, #tpu.memory_space<vmem>>) attributes {dimension_semantics = [#tpu.dimension_semantics<parallel>], iteration_bounds = array<i64: 2>, scalar_prefetch = 0 : i64, scratch_operands = 0 : i64, tpu.core_type = #tpu.core_type<tc>, window_params = [{pipeline_mode = #tpu.pipeline_mode<synchronous>, transform_indices = @transform_0, window_bounds = array<i64: 64, 196>}, {pipeline_mode = #tpu.pipeline_mode<synchronous>, transform_indices = @transform_1, window_bounds = array<i64: 64, 196>}, {transform_indices = @transform_2, window_bounds = array<i64: 16, 64>}, {transform_indices = @transform_3, window_bounds = array<i64: 16, 1>}, {transform_indices = @transform_4, window_bounds = array<i64: 16, 1>}, {transform_indices = @transform_5, window_bounds = array<i64: 16, 196>}]} {
    %c0 = arith.constant 0 : index
    %c0_0 = arith.constant 0 : index
    %0 = vector.load %arg1[%c0, %c0_0] : memref<64x196xf32, #tpu.memory_space<vmem>>, vector<64x196xf32>
    %c0_1 = arith.constant 0 : index
    %c0_2 = arith.constant 0 : index
    %1 = vector.load %arg2[%c0_1, %c0_2] : memref<64x196xf32, #tpu.memory_space<vmem>>, vector<64x196xf32>
    %2 = arith.addf %0, %1 : vector<64x196xf32>
    %cst = arith.constant 0.000000e+00 : f32
    %3 = vector.broadcast %cst : f32 to vector<64x196xf32>
    %4 = arith.maximumf %2, %3 : vector<64x196xf32>
    %c0_3 = arith.constant 0 : index
    %c0_4 = arith.constant 0 : index
    %5 = vector.load %arg3[%c0_3, %c0_4] : memref<16x64xf32, #tpu.memory_space<vmem>>, vector<16x64xf32>
    %cst_5 = arith.constant dense<0.000000e+00> : vector<16x196xf32>
    %6 = tpu.matmul %5, %4, %cst_5 {dimension_numbers = #tpu.dot_dimension_numbers<[1], [0], [0], [1], [0, 0, 1, 1], [], []>} : vector<16x64xf32>, vector<64x196xf32>, vector<16x196xf32> -> vector<16x196xf32>
    %cst_6 = arith.constant dense<0.000000e+00> : vector<16xf32>
    %7 = vector.multi_reduction <add>, %6, %cst_6 [1] : vector<16x196xf32> to vector<16xf32>
    %8 = vector.shape_cast %7 : vector<16xf32> to vector<16x1xf32>
    %9 = arith.mulf %6, %6 : vector<16x196xf32>
    %cst_7 = arith.constant dense<0.000000e+00> : vector<16xf32>
    %10 = vector.multi_reduction <add>, %9, %cst_7 [1] : vector<16x196xf32> to vector<16xf32>
    %11 = vector.shape_cast %10 : vector<16xf32> to vector<16x1xf32>
    %cst_8 = arith.constant 0.00510204071 : f32
    %12 = vector.broadcast %cst_8 : f32 to vector<16x1xf32>
    %13 = arith.mulf %8, %12 : vector<16x1xf32>
    %cst_9 = arith.constant 0.00510204071 : f32
    %14 = vector.broadcast %cst_9 : f32 to vector<16x1xf32>
    %15 = arith.mulf %11, %14 : vector<16x1xf32>
    %16 = arith.mulf %13, %13 : vector<16x1xf32>
    %17 = arith.subf %15, %16 : vector<16x1xf32>
    %cst_10 = arith.constant 0.000000e+00 : f32
    %18 = vector.broadcast %cst_10 : f32 to vector<16x1xf32>
    %19 = arith.maximumf %17, %18 : vector<16x1xf32>
    %cst_11 = arith.constant 9.99999974E-6 : f32
    %20 = vector.broadcast %cst_11 : f32 to vector<16x1xf32>
    %21 = arith.addf %19, %20 : vector<16x1xf32>
    %22 = math.rsqrt %21 : vector<16x1xf32>
    %c0_12 = arith.constant 0 : index
    %c0_13 = arith.constant 0 : index
    %23 = vector.load %arg4[%c0_12, %c0_13] : memref<16x1xf32, #tpu.memory_space<vmem>>, vector<16x1xf32>
    %24 = arith.mulf %22, %23 : vector<16x1xf32>
    %c0_14 = arith.constant 0 : index
    %c0_15 = arith.constant 0 : index
    %25 = vector.load %arg5[%c0_14, %c0_15] : memref<16x1xf32, #tpu.memory_space<vmem>>, vector<16x1xf32>
    %26 = arith.mulf %13, %24 : vector<16x1xf32>
    %27 = arith.subf %25, %26 : vector<16x1xf32>
    %28 = vector.broadcast %24 : vector<16x1xf32> to vector<16x196xf32>
    %29 = arith.mulf %6, %28 : vector<16x196xf32>
    %30 = vector.broadcast %27 : vector<16x1xf32> to vector<16x196xf32>
    %31 = arith.addf %29, %30 : vector<16x196xf32>
    %c0_16 = arith.constant 0 : index
    %c0_17 = arith.constant 0 : index
    %32 = vector.load %arg6[%c0_16, %c0_17] : memref<16x196xf32, #tpu.memory_space<vmem>>, vector<16x196xf32>
    tpu.vector_store %arg6[%c0_16, %c0_17], %31 {strides = array<i32>} : memref<16x196xf32, #tpu.memory_space<vmem>>, vector<16x196xf32>,
    return
  }
  func.func @transform_0(%arg0: i32) -> (i32, i32) {
    %c0_i32 = arith.constant 0 : i32
    %c0_i32_0 = arith.constant 0 : i32
    %c0_i32_1 = arith.constant 0 : i32
    return %c0_i32, %c0_i32_0 : i32, i32
  }
  func.func @transform_1(%arg0: i32) -> (i32, i32) {
    %c0_i32 = arith.constant 0 : i32
    %c0_i32_0 = arith.constant 0 : i32
    %c0_i32_1 = arith.constant 0 : i32
    return %c0_i32, %c0_i32_0 : i32, i32
  }
  func.func @transform_2(%arg0: i32) -> (i32, i32) {
    %c0_i32 = arith.constant 0 : i32
    %c0_i32_0 = arith.constant 0 : i32
    return %arg0, %c0_i32 : i32, i32
  }
  func.func @transform_3(%arg0: i32) -> (i32, i32) {
    %c0_i32 = arith.constant 0 : i32
    %c0_i32_0 = arith.constant 0 : i32
    return %arg0, %c0_i32 : i32, i32
  }
  func.func @transform_4(%arg0: i32) -> (i32, i32) {
    %c0_i32 = arith.constant 0 : i32
    %c0_i32_0 = arith.constant 0 : i32
    return %arg0, %c0_i32 : i32, i32
  }
  func.func @transform_5(%arg0: i32) -> (i32, i32) {
    %c0_i32 = arith.constant 0 : i32
    %c0_i32_0 = arith.constant 0 : i32
    return %arg0, %c0_i32 : i32, i32
  }
}

</mosaic_0001>

<llo_original>
// kernel: tpu_custom_call.1
$region0: #{tpu_custom_call.1}
  #allocation0 [shape = 'u32[]', space=smem, size = 0x4, offset = 0x4, fixed_abs, tag = 'smem constant byte address 0x4 - core index']
  #allocation1 [shape = 'u32[144,128]{1,0:T(1,128)}', space=vmem, size = 0x12000, scoped, tag = 'internal scratch']
  %s0 = inlined_call_operand.hbm [shape: f32[64,196], index: 0, kind: input, shape index: {}]
  %s1 = inlined_call_operand.hbm [shape: f32[64,196], index: 1, kind: input, shape index: {}]
  %s2 = inlined_call_operand.vmem [shape: f32[32,64], index: 2, kind: input, shape index: {}]
  %s3 = inlined_call_operand.vmem [shape: f32[32,1], index: 3, kind: input, shape index: {}]
  %s4 = inlined_call_operand.vmem [shape: f32[32,1], index: 4, kind: input, shape index: {}]
  %s5 = inlined_call_operand.hbm [shape: f32[32,196], index: 5, kind: output, shape index: {}]
  %s6 = sld [smem:[#allocation0]]
  $region61: #{tpu_custom_call.1} parent=0
    _
  %s8 = ssub.s32 1, %s6
  %s9 = scalar_select 0, %s8, %s6
  $region1: #{tpu_custom_call.1} parent=0
    #allocation2 [shape = 'u8[65536]{0}', space=vmem, size = 0x10000, scoped, tag = 'input window, operand 0, single buffered']
    #allocation3 [shape = 's32[2]{0}', space=sflag, size = 0x8, scoped, tag = 'scoped memory for tpu_custom_call.1']
    #allocation4 [shape = 's32[2]{0}', space=sflag, size = 0x8, scoped, tag = 'scoped memory for tpu_custom_call.1']
    #allocation5 [shape = 'u8[65536]{0}', space=vmem, size = 0x10000, scoped, tag = 'input window, operand 1, single buffered']
    #allocation6 [shape = 's32[1]{0}', space=sflag, size = 0x4, scoped, tag = 'scoped memory for tpu_custom_call.1']
    #allocation7 [shape = 'u8[32768]{0}', space=vmem, size = 0x8000, scoped, tag = 'output window, operand 0']
    %10 = vsyncpa [#allocation3], 0
    %11 = vsyncpa [#allocation6], 0
    %12 = vsyncpa [#allocation4], 0
    %s13 = scalar_lea.sflag [#allocation4], 1
    %14 = vsyncpa %s13, 0
    loop: start=0, step=1, limit=4
    $region2: #{tpu_custom_call.1} parent=1 // loop_pre_header
      _
    $region3: #{tpu_custom_call.1} parent=1 // loop_header
      %s16 = sphi 0, %s20
      %p17 = scmp.ge.s32.totalorder %s16, 4
      %s24 = sphi 0, %s24
      %s26 = sphi 0, %s24
      %s27 = sphi 0, %s26
      %s41 = sphi 0, %s27
      %s45 = sphi 0, %s45
      %s47 = sphi 0, %s45
      %s48 = sphi 0, %s47
      %s62 = sphi 0, %s48
      %s68 = sphi 0, %s70
      %s71 = sphi 0, %s68
      %s72 = sphi 0, %s71
      %s88 = sphi 0, %s72
      %s94 = sphi 0, %s96
      %s97 = sphi 0, %s94
      %s98 = sphi 0, %s97
      %s114 = sphi 0, %s98
      %s120 = sphi 0, %s122
      %s123 = sphi 0, %s120
      %s124 = sphi 0, %s123
      %s140 = sphi 0, %s124
      %s146 = sphi 0, %s148
      %s149 = sphi 0, %s146
      %s150 = sphi 0, %s149
      %s166 = sphi 0, %s150
    $region4: #{tpu_custom_call.1} parent=1 // loop_header_branch
      %19 = sbr.rel (%p17) target = $region8
    $region5: #{tpu_custom_call.1} parent=1 // loop_body
      %s21 = ssub.s32 %s16, 1
      %s22 = ssub.s32 %s16, 2
      %s23 = sadd.s32 %s16, 1
      %s25 = sadd.s32 %s24, 1
      %p28 = scmp.eq.s32.totalorder %s16, 1
      %p29 = scmp.ne.s32.totalorder %s24, %s26
      %p30 = scmp.eq.s32.totalorder %s16, 0
      %p31 = por %p29, %p30
      %p32 = scmp.ne.s32.totalorder %s24, %s26
      %p33 = scmp.eq.s32.totalorder %s21, 1
      %p34 = por %p32, %p33
      %p35 = scmp.ne.s32.totalorder %s26, %s27
      %p36 = scmp.eq.s32.totalorder %s21, 0
      %p37 = por %p35, %p36
      %p38 = scmp.ne.s32.totalorder %s26, %s27
      %p39 = scmp.eq.s32.totalorder %s22, 1
      %p40 = por %p38, %p39
      %p42 = scmp.ne.s32.totalorder %s27, %s41
      %p43 = scmp.eq.s32.totalorder %s22, 0
      %p44 = por %p42, %p43
      %s46 = sadd.s32 %s45, 1
      %p49 = scmp.eq.s32.totalorder %s16, 1
      %p50 = scmp.ne.s32.totalorder %s45, %s47
      %p51 = scmp.eq.s32.totalorder %s16, 0
      %p52 = por %p50, %p51
      %p53 = scmp.ne.s32.totalorder %s45, %s47
      %p54 = scmp.eq.s32.totalorder %s21, 1
      %p55 = por %p53, %p54
      %p56 = scmp.ne.s32.totalorder %s47, %s48
      %p57 = scmp.eq.s32.totalorder %s21, 0
      %p58 = por %p56, %p57
      %p59 = scmp.ne.s32.totalorder %s47, %s48
      %p60 = scmp.eq.s32.totalorder %s22, 1
      %p61 = por %p59, %p60
      %p63 = scmp.ne.s32.totalorder %s48, %s62
      %p64 = scmp.eq.s32.totalorder %s22, 0
      %p65 = por %p63, %p64
      %s66 = ssub.s32 %s16, %s23
      %p67 = scmp.eq.s32.totalorder %s66, 0
      %s69 = sadd.s32 %s68, 1
      %s70 = scalar_select %p67, %s68, %s69
      %p73 = pneg %p67
      %p74 = scmp.eq.s32.totalorder %s16, 1
      %p75 = por %p73, %p74
      %p76 = scmp.ne.s32.totalorder %s68, %s71
      %p77 = scmp.eq.s32.totalorder %s16, 0
      %p78 = por %p76, %p77
      %p79 = scmp.ne.s32.totalorder %s68, %s71
      %p80 = scmp.eq.s32.totalorder %s21, 1
      %p81 = por %p79, %p80
      %p82 = scmp.ne.s32.totalorder %s71, %s72
      %p83 = scmp.eq.s32.totalorder %s21, 0
      %p84 = por %p82, %p83
      %p85 = scmp.ne.s32.totalorder %s71, %s72
      %p86 = scmp.eq.s32.totalorder %s22, 1
      %p87 = por %p85, %p86
      %p89 = scmp.ne.s32.totalorder %s72, %s88
      %p90 = scmp.eq.s32.totalorder %s22, 0
      %p91 = por %p89, %p90
      %s92 = ssub.s32 %s16, %s23
      %p93 = scmp.eq.s32.totalorder %s92, 0
      %s95 = sadd.s32 %s94, 1
      %s96 = scalar_select %p93, %s94, %s95
      %p99 = pneg %p93
      %p100 = scmp.eq.s32.totalorder %s16, 1
      %p101 = por %p99, %p100
      %p102 = scmp.ne.s32.totalorder %s94, %s97
      %p103 = scmp.eq.s32.totalorder %s16, 0
      %p104 = por %p102, %p103
      %p105 = scmp.ne.s32.totalorder %s94, %s97
      %p106 = scmp.eq.s32.totalorder %s21, 1
      %p107 = por %p105, %p106
      %p108 = scmp.ne.s32.totalorder %s97, %s98
      %p109 = scmp.eq.s32.totalorder %s21, 0
      %p110 = por %p108, %p109
      %p111 = scmp.ne.s32.totalorder %s97, %s98
      %p112 = scmp.eq.s32.totalorder %s22, 1
      %p113 = por %p111, %p112
      %p115 = scmp.ne.s32.totalorder %s98, %s114
      %p116 = scmp.eq.s32.totalorder %s22, 0
      %p117 = por %p115, %p116
      %s118 = ssub.s32 %s16, %s23
      %p119 = scmp.eq.s32.totalorder %s118, 0
      %s121 = sadd.s32 %s120, 1
      %s122 = scalar_select %p119, %s120, %s121
      %p125 = pneg %p119
      %p126 = scmp.eq.s32.totalorder %s16, 1
      %p127 = por %p125, %p126
      %p128 = scmp.ne.s32.totalorder %s120, %s123
      %p129 = scmp.eq.s32.totalorder %s16, 0
      %p130 = por %p128, %p129
      %p131 = scmp.ne.s32.totalorder %s120, %s123
      %p132 = scmp.eq.s32.totalorder %s21, 1
      %p133 = por %p131, %p132
      %p134 = scmp.ne.s32.totalorder %s123, %s124
      %p135 = scmp.eq.s32.totalorder %s21, 0
      %p136 = por %p134, %p135
      %p137 = scmp.ne.s32.totalorder %s123, %s124
      %p138 = scmp.eq.s32.totalorder %s22, 1
      %p139 = por %p137, %p138
      %p141 = scmp.ne.s32.totalorder %s124, %s140
      %p142 = scmp.eq.s32.totalorder %s22, 0
      %p143 = por %p141, %p142
      %s144 = ssub.s32 %s16, %s23
      %p145 = scmp.eq.s32.totalorder %s144, 0
      %s147 = sadd.s32 %s146, 1
      %s148 = scalar_select %p145, %s146, %s147
      %p151 = pneg %p145
      %p152 = scmp.eq.s32.totalorder %s16, 1
      %p153 = por %p151, %p152
      %p154 = scmp.ne.s32.totalorder %s146, %s149
      %p155 = scmp.eq.s32.totalorder %s16, 0
      %p156 = por %p154, %p155
      %p157 = scmp.ne.s32.totalorder %s146, %s149
      %p158 = scmp.eq.s32.totalorder %s21, 1
      %p159 = por %p157, %p158
      %p160 = scmp.ne.s32.totalorder %s149, %s150
      %p161 = scmp.eq.s32.totalorder %s21, 0
      %p162 = por %p160, %p161
      %p163 = scmp.ne.s32.totalorder %s149, %s150
      %p164 = scmp.eq.s32.totalorder %s22, 1
      %p165 = por %p163, %p164
      %p167 = scmp.ne.s32.totalorder %s150, %s166
      %p168 = scmp.eq.s32.totalorder %s22, 0
      %p169 = por %p167, %p168
      %p170 = scmp.le.s32.totalorder 1, %s16
      %p171 = scmp.lt.s32.totalorder %s16, 3
      %p172 = pnand %p170, %p171
      %p173 = pneg %p172
      // Predicated region
      $region9: #{tpu_custom_call.1} parent=5 // pred_check
        _
      $region10: #{tpu_custom_call.1} parent=5 // pred_check_branch
        %175 = sbr.rel (%p172) target = $region12
      $region11: #{tpu_custom_call.1} parent=5 // pred_region
        %s176 = ssub.s32 %s16, 1
        // Predicated region
        $region13: #{tpu_custom_call.1} parent=11 // pred_check
          %p177 = pneg %p37
        $region14: #{tpu_custom_call.1} parent=11 // pred_check_branch
          %179 = sbr.rel (%p177) target = $region16
        $region15: #{tpu_custom_call.1} parent=11 // pred_region
          %s181 = ssub.s32 2048, 2048
          %182 = vsyncadd [#allocation3], %s181
          %s183 = sshll.u32 [#allocation2], 4
          %s184 = int_to_ptr.vmem [resolvable:$true] %s183
          %189 = dma.hbm_to_vmem [thread:$0]  %s0, 2048, %s184, [#allocation3], 256, 256, 16
        $region16: #{tpu_custom_call.1} parent=11 // pred_fallthru
          _
        // Predicated region
        $region17: #{tpu_custom_call.1} parent=11 // pred_check
          %p190 = pneg %p58
        $region18: #{tpu_custom_call.1} parent=11 // pred_check_branch
          %192 = sbr.rel (%p190) target = $region20
        $region19: #{tpu_custom_call.1} parent=11 // pred_region
          %s194 = ssub.s32 2048, 2048
          %195 = vsyncadd [#allocation6], %s194
          %s196 = sshll.u32 [#allocation5], 4
          %s197 = int_to_ptr.vmem [resolvable:$true] %s196
          %202 = dma.hbm_to_vmem [thread:$0]  %s1, 2048, %s197, [#allocation6], 256, 256, 16
        $region20: #{tpu_custom_call.1} parent=11 // pred_fallthru
          _
      $region12: #{tpu_custom_call.1} parent=5 // pred_fallthru
        _
      %p203 = scmp.lt.s32.totalorder %s16, 2
      // Predicated region
      $region21: #{tpu_custom_call.1} parent=5 // pred_check
        %p204 = pneg %p203
      $region22: #{tpu_custom_call.1} parent=5 // pred_check_branch
        %206 = sbr.rel (%p204) target = $region24
      $region23: #{tpu_custom_call.1} parent=5 // pred_region
        // Predicated region
        $region25: #{tpu_custom_call.1} parent=23 // pred_check
          %p207 = pneg %p78
        $region26: #{tpu_custom_call.1} parent=23 // pred_check_branch
          %209 = sbr.rel (%p207) target = $region28
        $region27: #{tpu_custom_call.1} parent=23 // pred_region
          %s210 = smul.u32 2, %s16
          %p211 = scmp.lt.s32.totalorder %s210, 3
          %s212 = scalar_select %p211, %s210, 3
          %s213 = smul.addr %s212, 8
          %s214 = scalar_lea.vmem %s2, %s213
          %s215 = smul.u32 2, %s16
        $region28: #{tpu_custom_call.1} parent=23 // pred_fallthru
          _
        // Predicated region
        $region29: #{tpu_custom_call.1} parent=23 // pred_check
          %p216 = pneg %p104
        $region30: #{tpu_custom_call.1} parent=23 // pred_check_branch
          %218 = sbr.rel (%p216) target = $region32
        $region31: #{tpu_custom_call.1} parent=23 // pred_region
          %s219 = smul.u32 2, %s16
          %p220 = scmp.lt.s32.totalorder %s219, 3
          %s221 = scalar_select %p220, %s219, 3
          %s222 = smul.addr %s221, 8
          %s223 = scalar_lea.vmem %s3, %s222
          %s224 = smul.u32 2, %s16
        $region32: #{tpu_custom_call.1} parent=23 // pred_fallthru
          _
        // Predicated region
        $region33: #{tpu_custom_call.1} parent=23 // pred_check
          %p225 = pneg %p130
        $region34: #{tpu_custom_call.1} parent=23 // pred_check_branch
          %227 = sbr.rel (%p225) target = $region36
        $region35: #{tpu_custom_call.1} parent=23 // pred_region
          %s228 = smul.u32 2, %s16
          %p229 = scmp.lt.s32.totalorder %s228, 3
          %s230 = scalar_select %p229, %s228, 3
          %s231 = smul.addr %s230, 8
          %s232 = scalar_lea.vmem %s4, %s231
          %s233 = smul.u32 2, %s16
        $region36: #{tpu_custom_call.1} parent=23 // pred_fallthru
          _
      $region24: #{tpu_custom_call.1} parent=5 // pred_fallthru
        _
      %p234 = scmp.le.s32.totalorder 1, %s16
      %p235 = scmp.lt.s32.totalorder %s16, 3
      %p236 = pnand %p234, %p235
      %p237 = pneg %p236
      // Predicated region
      $region37: #{tpu_custom_call.1} parent=5 // pred_check
        _
      $region38: #{tpu_custom_call.1} parent=5 // pred_check_branch
        %239 = sbr.rel (%p236) target = $region40
      $region39: #{tpu_custom_call.1} parent=5 // pred_region
        %s240 = ssub.s32 %s16, 1
        // Predicated region
        $region41: #{tpu_custom_call.1} parent=39 // pred_check
          %p241 = pneg %p37
        $region42: #{tpu_custom_call.1} parent=39 // pred_check_branch
          %243 = sbr.rel (%p241) target = $region44
        $region43: #{tpu_custom_call.1} parent=39 // pred_region
          %244 = dma.done [#allocation3], 2048
        $region44: #{tpu_custom_call.1} parent=39 // pred_fallthru
          _
        // Predicated region
        $region45: #{tpu_custom_call.1} parent=39 // pred_check
          %p245 = pneg %p58
        $region46: #{tpu_custom_call.1} parent=39 // pred_check_branch
          %247 = sbr.rel (%p245) target = $region48
        $region47: #{tpu_custom_call.1} parent=39 // pred_region
          %248 = dma.done [#allocation6], 2048
        $region48: #{tpu_custom_call.1} parent=39 // pred_fallthru
          _
        %p249 = pneg %p37
        %p250 = pneg %p34
        %p251 = pneg %p58
        %p252 = pneg %p55
        %s253 = smul.u32 2, %s21
        %p254 = scmp.lt.s32.totalorder %s253, 3
        %s255 = scalar_select %p254, %s253, 3
        %s256 = smul.addr %s255, 8
        %s257 = scalar_lea.vmem %s2, %s256
        %p258 = pneg %p84
        %p259 = pneg %p81
        %s260 = smul.u32 2, %s21
        %p261 = scmp.lt.s32.totalorder %s260, 3
        %s262 = scalar_select %p261, %s260, 3
        %s263 = smul.addr %s262, 8
        %s264 = scalar_lea.vmem %s3, %s263
        %p265 = pneg %p110
        %p266 = pneg %p107
        %s267 = smul.u32 2, %s21
        %p268 = scmp.lt.s32.totalorder %s267, 3
        %s269 = scalar_select %p268, %s267, 3
        %s270 = smul.addr %s269, 8
        %s271 = scalar_lea.vmem %s4, %s270
        %p272 = pneg %p136
        %p273 = pneg %p133
        %p274 = pneg %p162
        %p275 = pneg %p159
        %s276 = sand.u32 %s149, 1
        %s277 = scalar_lea.sflag [#allocation4], %s276
        %s278 = sand.u32 %s149, 1
        %s279 = smul.addr %s278, 32
        %s280 = scalar_lea.vmem [#allocation7], %s279
        %s281 = smul.u32 2, %s21
        %p282 = scmp.lt.s32.totalorder %s281, 3
        %s283 = scalar_select %p282, %s281, 3
        %s284 = smul.addr %s283, 8
        %s285 = scalar_lea.vmem %s2, %s284
        %s286 = smul.u32 2, %s21
        %s287 = smul.u32 2, %s21
        %p288 = scmp.lt.s32.totalorder %s287, 3
        %s289 = scalar_select %p288, %s287, 3
        %s290 = smul.addr %s289, 8
        %s291 = scalar_lea.vmem %s3, %s290
        %s292 = smul.u32 2, %s21
        %s293 = smul.u32 2, %s21
        %p294 = scmp.lt.s32.totalorder %s293, 3
        %s295 = scalar_select %p294, %s293, 3
        %s296 = smul.addr %s295, 8
        %s297 = scalar_lea.vmem %s4, %s296
        %s298 = smul.u32 2, %s21
        %s299 = smul.u32 2, %s21
        %v300 = vld [vmem:[#allocation2] sm:$0xff]
        %v301 = vld [vmem:[#allocation2 + $0x8] sm:$0xff]
        %v302 = vld [vmem:[#allocation2 + $0x10] sm:$0xff]
        %v303 = vld [vmem:[#allocation2 + $0x18] sm:$0xff]
        %v304 = vld [vmem:[#allocation2 + $0x20] sm:$0xff]
        %v305 = vld [vmem:[#allocation2 + $0x28] sm:$0xff]
        %v306 = vld [vmem:[#allocation2 + $0x30] sm:$0xff]
        %v307 = vld [vmem:[#allocation2 + $0x38] sm:$0xff]
        %v308 = vld [vmem:[#allocation2 + $0x40] sm:$0xff]
        %v309 = vld [vmem:[#allocation2 + $0x48] sm:$0xff]
        %v310 = vld [vmem:[#allocation2 + $0x50] sm:$0xff]
        %v311 = vld [vmem:[#allocation2 + $0x58] sm:$0xff]
        %v312 = vld [vmem:[#allocation2 + $0x60] sm:$0xff]
        %v313 = vld [vmem:[#allocation2 + $0x68] sm:$0xff]
        %v314 = vld [vmem:[#allocation2 + $0x70] sm:$0xff]
        %v315 = vld [vmem:[#allocation2 + $0x78] sm:$0xff]
        %v316 = vld [vmem:[#allocation5] sm:$0xff]
        %v317 = vld [vmem:[#allocation5 + $0x8] sm:$0xff]
        %v318 = vld [vmem:[#allocation5 + $0x10] sm:$0xff]
        %v319 = vld [vmem:[#allocation5 + $0x18] sm:$0xff]
        %v320 = vld [vmem:[#allocation5 + $0x20] sm:$0xff]
        %v321 = vld [vmem:[#allocation5 + $0x28] sm:$0xff]
        %v322 = vld [vmem:[#allocation5 + $0x30] sm:$0xff]
        %v323 = vld [vmem:[#allocation5 + $0x38] sm:$0xff]
        %v324 = vld [vmem:[#allocation5 + $0x40] sm:$0xff]
        %v325 = vld [vmem:[#allocation5 + $0x48] sm:$0xff]
        %v326 = vld [vmem:[#allocation5 + $0x50] sm:$0xff]
        %v327 = vld [vmem:[#allocation5 + $0x58] sm:$0xff]
        %v328 = vld [vmem:[#allocation5 + $0x60] sm:$0xff]
        %v329 = vld [vmem:[#allocation5 + $0x68] sm:$0xff]
        %v330 = vld [vmem:[#allocation5 + $0x70] sm:$0xff]
        %v331 = vld [vmem:[#allocation5 + $0x78] sm:$0xff]
        %v332 = vadd.f32 %v300, %v316
        %v333 = vadd.f32 %v301, %v317
        %v334 = vadd.f32 %v302, %v318
        %v335 = vadd.f32 %v303, %v319
        %v336 = vadd.f32 %v304, %v320
        %v337 = vadd.f32 %v305, %v321
        %v338 = vadd.f32 %v306, %v322
        %v339 = vadd.f32 %v307, %v323
        %v340 = vadd.f32 %v308, %v324
        %v341 = vadd.f32 %v309, %v325
        %v342 = vadd.f32 %v310, %v326
        %v343 = vadd.f32 %v311, %v327
        %v344 = vadd.f32 %v312, %v328
        %v345 = vadd.f32 %v313, %v329
        %v346 = vadd.f32 %v314, %v330
        %v347 = vadd.f32 %v315, %v331
        %v348 = vmax.f32 %v332, 0.0
        %v349 = vmax.f32 %v333, 0.0
        %v350 = vmax.f32 %v334, 0.0
        %v351 = vmax.f32 %v335, 0.0
        %v352 = vmax.f32 %v336, 0.0
        %v353 = vmax.f32 %v337, 0.0
        %v354 = vmax.f32 %v338, 0.0
        %v355 = vmax.f32 %v339, 0.0
        %v356 = vmax.f32 %v340, 0.0
        %v357 = vmax.f32 %v341, 0.0
        %v358 = vmax.f32 %v342, 0.0
        %v359 = vmax.f32 %v343, 0.0
        %v360 = vmax.f32 %v344, 0.0
        %v361 = vmax.f32 %v345, 0.0
        %v362 = vmax.f32 %v346, 0.0
        %v363 = vmax.f32 %v347, 0.0
        %v364 = vld [vmem:[%s285] sm:$0xff]
        %v365 = vld [vmem:[%s285 + $0x8] sm:$0xff]
        %vm366 = vcmask 523264
        %v368 = vsel %vm366, %v364, 0
        %v371 = vsel %vm366, %v365, 0
        %373 = vmatprep.subr.mxu0 0.0
        %374 = vmatpush1.msra.mxu0 0.0
        %375 = vmatprep.subr.mxu0 0.0
        %376 = vmatpush1.msra.mxu0 0.0
        %377 = vmatprep.subr.mxu0 0.0
        %378 = vmatpush1.msra.mxu0 0.0
        %379 = vmatprep.subr.mxu0 0.0
        %380 = vmatpush1.msra.mxu0 0.0
        %381 = vmatprep.subr.mxu0 0.0
        %382 = vmatpush1.msra.mxu0 0.0
        %383 = vmatprep.subr.mxu0 0.0
        %384 = vmatpush1.msra.mxu0 0.0
        %385 = vmatprep.subr.mxu0 0.0
        %386 = vmatpush1.msra.mxu0 0.0
        %387 = vmatprep.subr.mxu0 0.0
        %388 = vmatpush1.msra.mxu0 0.0
        %389 = vmatprep.subr.mxu0 %v363
        %390 = vmatpush1.msra.mxu0 %v362
        %391 = vmatprep.subr.mxu0 %v361
        %392 = vmatpush1.msra.mxu0 %v360
        %393 = vmatprep.subr.mxu0 %v359
        %394 = vmatpush1.msra.mxu0 %v358
        %395 = vmatprep.subr.mxu0 %v357
        %396 = vmatpush1.msra.mxu0 %v356
        %397 = vmatprep.subr.mxu0 %v355
        %398 = vmatpush1.msra.mxu0 %v354
        %399 = vmatprep.subr.mxu0 %v353
        %400 = vmatpush1.msra.mxu0 %v352
        %401 = vmatprep.subr.mxu0 %v351
        %402 = vmatpush1.msra.mxu0 %v350
        %403 = vmatprep.subr.mxu0 %v349
        %404 = vmatpush1.msra.mxu0 %v348
        %405 = vmatprep.subr.mxu0 0.0
        %406 = vmatpush2.msra.mxu0 0.0
        %407 = vmatprep.subr.mxu0 0.0
        %408 = vmatpush2.msra.mxu0 0.0
        %409 = vmatprep.subr.mxu0 0.0
        %410 = vmatpush2.msra.mxu0 0.0
        %411 = vmatprep.subr.mxu0 0.0
        %412 = vmatpush2.msra.mxu0 0.0
        %413 = vmatprep.subr.mxu0 0.0
        %414 = vmatpush2.msra.mxu0 0.0
        %415 = vmatprep.subr.mxu0 0.0
        %416 = vmatpush2.msra.mxu0 0.0
        %417 = vmatprep.subr.mxu0 0.0
        %418 = vmatpush2.msra.mxu0 0.0
        %419 = vmatprep.subr.mxu0 0.0
        %420 = vmatpush2.msra.mxu0 0.0
        %421 = vmatprep.subr.mxu0 0.0
        %422 = vmatpush2.msra.mxu0 0.0
        %423 = vmatprep.subr.mxu0 0.0
        %424 = vmatpush2.msra.mxu0 0.0
        %425 = vmatprep.subr.mxu0 0.0
        %426 = vmatpush2.msra.mxu0 0.0
        %427 = vmatprep.subr.mxu0 0.0
        %428 = vmatpush2.msra.mxu0 0.0
        %429 = vmatprep.subr.mxu0 0.0
        %430 = vmatpush2.msra.mxu0 0.0
        %431 = vmatprep.subr.mxu0 0.0
        %432 = vmatpush2.msra.mxu0 0.0
        %433 = vmatprep.subr.mxu0 0.0
        %434 = vmatpush2.msra.mxu0 0.0
        %435 = vmatprep.subr.mxu0 0.0
        %436 = vmatpush2.msra.mxu0 0.0
        %437 = vmatprep.mubr.f32.mxu0 0.0
        %438 = vmatmul.mubr.f32.gmra.mxu0 %v368
        %v439 = vpop.f32.mrf.mxu0
        %v440 = vadd.f32 0.0, %v439
        %v441 = vpop.f32.mrf.mxu0
        %v442 = vadd.f32 0.0, %v441
        %443 = vmatprep.mubr.f32.mxu0 0.0
        %444 = vmatmul.mubr.f32.gmra.mxu0 %v371
        %v445 = vpop.f32.mrf.mxu0
        %v446 = vadd.f32 0.0, %v445
        %v447 = vpop.f32.mrf.mxu0
        %v448 = vadd.f32 0.0, %v447
        %449 = vdwg.mxu0
        %vm450 = vcmask 556032
        %v451 = vsel %vm450, %v442, 0.0
        %v452 = vadd.f32 %v440, %v451
        %453 = vadd.xlane.f32.xlu0 %v452
        %v454 = vpop.xlane.xlu0 %453
        %v455 = vsel %vm450, %v448, 0.0
        %v456 = vadd.f32 %v446, %v455
        %457 = vadd.xlane.f32.xlu0 %v456
        %v458 = vpop.xlane.xlu0 %457
        %v459 = vmul.f32 %v440, %v440
        %v460 = vmul.f32 %v442, %v442
        %v461 = vmul.f32 %v446, %v446
        %v462 = vmul.f32 %v448, %v448
        %v463 = vsel %vm450, %v460, 0.0
        %v464 = vadd.f32 %v459, %v463
        %465 = vadd.xlane.f32.xlu0 %v464
        %v466 = vpop.xlane.xlu0 %465
        %v467 = vsel %vm450, %v462, 0.0
        %v468 = vadd.f32 %v461, %v467
        %469 = vadd.xlane.f32.xlu0 %v468
        %v470 = vpop.xlane.xlu0 %469
        %v471 = vmul.f32 %v454, 0.0051020407
        %v472 = vmul.f32 %v458, 0.0051020407
        %v473 = vmul.f32 %v466, 0.0051020407
        %v474 = vmul.f32 %v470, 0.0051020407
        %v475 = vmul.f32 %v471, %v471
        %v476 = vmul.f32 %v472, %v472
        %v477 = vsub.f32 %v473, %v475
        %v478 = vsub.f32 %v474, %v476
        %v479 = vmax.f32 %v477, 0.0
        %v480 = vmax.f32 %v478, 0.0
        %v481 = vadd.f32 %v479, 1e-05
        %v482 = vadd.f32 %v480, 1e-05
        %v483 = vrsqrt.pop %v481
        %v484 = vrsqrt.pop %v482
        %v485 = vld [vmem:[%s291] sm:$0xff]
        %v486 = vld [vmem:[%s291 + $0x8] sm:$0xff]
        %v487 = vmul.f32 %v483, %v485
        %v488 = vmul.f32 %v484, %v486
        %v489 = vld [vmem:[%s297] sm:$0xff]
        %v490 = vld [vmem:[%s297 + $0x8] sm:$0xff]
        %v491 = vmul.f32 %v471, %v487
        %v492 = vmul.f32 %v472, %v488
        %v493 = vsub.f32 %v489, %v491
        %v494 = vsub.f32 %v490, %v492
        %496 = vset.pattern.permute.xlu0 0
        %497 = vperm.xlu0 %496, %v487
        %v498 = vpop.permute.xlu0 %497
        %501 = vset.pattern.permute.xlu0 0
        %502 = vperm.xlu0 %501, %v488
        %v503 = vpop.permute.xlu0 %502
        %v505 = vmul.f32 %v440, %v498
        %v506 = vmul.f32 %v442, %v498
        %v507 = vmul.f32 %v446, %v503
        %v508 = vmul.f32 %v448, %v503
        %510 = vset.pattern.permute.xlu0 0
        %511 = vperm.xlu0 %510, %v493
        %v512 = vpop.permute.xlu0 %511
        %515 = vset.pattern.permute.xlu0 0
        %516 = vperm.xlu0 %515, %v494
        %v517 = vpop.permute.xlu0 %516
        %v519 = vadd.f32 %v505, %v512
        %v520 = vadd.f32 %v506, %v512
        %v521 = vadd.f32 %v507, %v517
        %v522 = vadd.f32 %v508, %v517
        %523 = vst [vmem:[%s280] sm:$0xff] %v519
        %524 = vst.msk [vmem:[%s280 + $0x8] sm:$0xff] %vm450, %v520
        %525 = vst [vmem:[%s280 + $0x10] sm:$0xff] %v521
        %526 = vst.msk [vmem:[%s280 + $0x18] sm:$0xff] %vm450, %v522
        %s527 = sand.u32 %s149, 1
        %s528 = scalar_lea.sflag [#allocation4], %s527
        %s529 = sand.u32 %s149, 1
        %s530 = smul.addr %s529, 32
        %s531 = scalar_lea.vmem [#allocation7], %s530
        // Predicated region
        $region49: #{tpu_custom_call.1} parent=39 // pred_check
          %p532 = pneg %p159
        $region50: #{tpu_custom_call.1} parent=39 // pred_check_branch
          %534 = sbr.rel (%p532) target = $region52
        $region51: #{tpu_custom_call.1} parent=39 // pred_region
          %s535 = smul.u32 2, %s21
          %s537 = ssub.s32 512, 512
          %538 = vsyncadd %s528, %s537
          %s539 = smul.addr %s535, 2
          %s540 = smul.addr %s539, 128
          %s541 = scalar_lea.hbm %s5, %s540
          %s542 = sshll.u32 %s531, 4
          %s543 = int_to_ptr.vmem [resolvable:$true] %s542
          %548 = dma.vmem_to_hbm [thread:$0]  %s543, 512, %s541, %s528, 256, 256, 16
        $region52: #{tpu_custom_call.1} parent=39 // pred_fallthru
          _
      $region40: #{tpu_custom_call.1} parent=5 // pred_fallthru
        _
      %p549 = scmp.le.s32.totalorder 2, %s16
      // Predicated region
      $region53: #{tpu_custom_call.1} parent=5 // pred_check
        %p550 = pneg %p549
      $region54: #{tpu_custom_call.1} parent=5 // pred_check_branch
        %552 = sbr.rel (%p550) target = $region56
      $region55: #{tpu_custom_call.1} parent=5 // pred_region
        %s553 = ssub.s32 %s16, 2
        // Predicated region
        $region57: #{tpu_custom_call.1} parent=55 // pred_check
          %p554 = pneg %p165
        $region58: #{tpu_custom_call.1} parent=55 // pred_check_branch
          %556 = sbr.rel (%p554) target = $region60
        $region59: #{tpu_custom_call.1} parent=55 // pred_region
          %s557 = sand.u32 %s150, 1
          %s558 = scalar_lea.sflag [#allocation4], %s557
          %s559 = sand.u32 %s150, 1
          %s560 = smul.addr %s559, 32
          %s561 = scalar_lea.vmem [#allocation7], %s560
          %562 = dma.done %s558, 512
        $region60: #{tpu_custom_call.1} parent=55 // pred_fallthru
          _
      $region56: #{tpu_custom_call.1} parent=5 // pred_fallthru
        _
    $region6: #{tpu_custom_call.1} parent=1 // loop_footer
      %s20 = sadd.s32 1, %s16
    $region7: #{tpu_custom_call.1} parent=1 // loop_footer_branch
      %15 = sbr.rel target = $region3
    $region8: #{tpu_custom_call.1} parent=1 // loop_exit
      _
    %563 = vsyncpa [#allocation3], 1
    %s564 = scalar_lea.sflag [#allocation3], 1
    %565 = vsyncpa %s564, 1
    %566 = vsyncpa [#allocation6], 1
    %567 = vsyncpa [#allocation4], 1
    %s568 = scalar_lea.sflag [#allocation4], 1
    %569 = vsyncpa %s568, 1

</llo_original>
